<compile_context>
chip_gen: v5e
topology: v5e:2x2
jax: 0.10.0
libtpu: 0.0.40
codegen_flags: <defaults>
</compile_context>

<pallas_src>
import jax
import jax.numpy as jnp
from jax.experimental import pallas as pl


def _make_net_seq_kernel(T, H):
    """Build a kernel with the (static) sequence length and hidden size baked in."""

    def kernel(x_ref, h0_ref, wx_ref, wh_ref, b_ref, out_ref, hout_ref):
        # x_ref:  (T, B, CI)   per-step [category | input]
        # h0_ref: (B, H)       initial hidden
        # wx_ref: (CI, H+O)    fused [w_i2h | W_eff] rows for the x segment
        # wh_ref: (H,  H+O)    fused [w_i2h | W_eff] rows for the hidden segment
        # b_ref:  (1,  H+O)    fused [b_i2h | b_eff]
        # out_ref:(T, B, O)    log-probs, resident in VMEM, flushed once
        # hout_ref:(B, H)      final hidden
        wx = wx_ref[...]
        wh = wh_ref[...]
        b = b_ref[...]
        h = h0_ref[...]                       # hidden lives in vregs across steps

        # T is small & static: fully unrolled, all indices static.
        for t in range(T):
            x = x_ref[t]                      # (B, CI)
            # One fused affine per step: z = [x | h] @ [w_i2h | W_eff] + [b_i2h | b_eff]
            z = (jnp.dot(x, wx, preferred_element_type=jnp.float32)
                 + jnp.dot(h, wh, preferred_element_type=jnp.float32)
                 + b)                         # (B, H+O)
            h = z[:, :H]                      # hidden_new = i2h(...)
            o2 = z[:, H:]                     # o2o(cat(i2h(...), i2o(...)))  (exact fold)

            # dropout(p=0.1): identity at inference.
            # TODO(synk): training-mode dropout would need pltpu.prng_seed /
            #             prng_random_bits masking plus 1/(1-p) scaling.

            # log_softmax over the feature (lane) axis, max-subtracted, f32 VPU/EUP.
            m = jnp.max(o2, axis=-1, keepdims=True)
            zc = o2 - m
            lse = jnp.log(jnp.sum(jnp.exp(zc), axis=-1, keepdims=True))
            out_ref[t] = zc - lse             # store into resident output block

        hout_ref[...] = h

    return kernel


def _prep_kernel_params(p, ci):
    """Fold the i2o->o2o chain, fuse with i2h along the output axis, and split the
    resulting weight row-wise by input segment ([category|input] vs hidden)."""
    H = p["w_i2h"].shape[1]
    w_o2o_h = p["w_o2o"][:H, :]
    w_o2o_o = p["w_o2o"][H:, :]
    w_eff = p["w_i2h"] @ w_o2o_h + p["w_i2o"] @ w_o2o_o                  # (C, O)
    b_eff = p["b_i2h"] @ w_o2o_h + p["b_i2o"] @ w_o2o_o + p["b_o2o"]     # (1, O)

    w_x = jnp.concatenate([p["w_i2h"][:ci], w_eff[:ci]], axis=1)         # (CI, H+O)
    w_h = jnp.concatenate([p["w_i2h"][ci:], w_eff[ci:]], axis=1)         # (H,  H+O)
    b = jnp.concatenate([p["b_i2h"], b_eff], axis=1)                     # (1,  H+O)
    return w_x, w_h, b


def net_forward_seq(category_seq, input_seq, hidden0, params):
    """Runs T timesteps of Net in a single pallas_call (no grid).
    category_seq: (T,B,Nc), input_seq: (T,B,I), hidden0: (B,H).
    Returns (log_probs: (T,B,O), hidden_final: (B,H))."""
    T, B, Nc = category_seq.shape
    I = input_seq.shape[-1]
    H = hidden0.shape[-1]
    CI = Nc + I
    w_x, w_h, b = _prep_kernel_params(params, CI)
    O = w_x.shape[1] - H

    # One wrapper-side concat of the non-recurrent inputs for the whole sequence.
    x_ci = jnp.concatenate([category_seq, input_seq], axis=-1)           # (T, B, CI)

    out, h_final = pl.pallas_call(
        _make_net_seq_kernel(T, H),
        # No grid / no BlockSpecs: every operand is passed whole, resident in VMEM
        # (total footprint ~20 KB << VMEM on v5e/v6e/v7x), DMA'd exactly once.
        out_shape=[
            jax.ShapeDtypeStruct((T, B, O), jnp.float32),
            jax.ShapeDtypeStruct((B, H), jnp.float32),
        ],
    )(x_ci, hidden0, w_x, w_h, b)
    return out, h_final


def net_forward(category, inp, hidden, params):
    """Single-step forward (matches the PyTorch module's forward exactly once)."""
    out, h = net_forward_seq(category[None], inp[None], hidden, params)
    return out[0], h


def init_params(key, n_categories, input_size, hidden_size, output_size):
    """nn.Linear-style U(-1/sqrt(fan_in), 1/sqrt(fan_in)) init; weights stored
    transposed as (in_features, out_features) so kernels compute y = x @ W + b."""
    C = n_categories + input_size + hidden_size
    ks = jax.random.split(key, 6)

    def lin(kw, kb, fan_in, fan_out):
        bound = 1.0 / jnp.sqrt(fan_in)
        w = jax.random.uniform(kw, (fan_in, fan_out), jnp.float32, -bound, bound)
        b = jax.random.uniform(kb, (1, fan_out), jnp.float32, -bound, bound)
        return w, b

    w_i2h, b_i2h = lin(ks[0], ks[1], C, hidden_size)
    w_i2o, b_i2o = lin(ks[2], ks[3], C, output_size)
    w_o2o, b_o2o = lin(ks[4], ks[5], hidden_size + output_size, output_size)
    return {"w_i2h": w_i2h, "b_i2h": b_i2h,
            "w_i2o": w_i2o, "b_i2o": b_i2o,
            "w_o2o": w_o2o, "b_o2o": b_o2o}


def _ref_step(category, inp, hidden, p):
    """Pure-JAX reference with the exact PyTorch op order (no folding)."""
    x = jnp.concatenate([category, inp, hidden], axis=1)
    h = x @ p["w_i2h"] + p["b_i2h"]
    o1 = x @ p["w_i2o"] + p["b_i2o"]
    o2 = jnp.concatenate([h, o1], axis=1) @ p["w_o2o"] + p["b_o2o"]
    return jax.nn.log_softmax(o2, axis=1), h


if __name__ == "__main__":
    n_categories, input_size, hidden_size, output_size = 4, 8, 32, 16
    batch, seq_len = 8, 8           # batch >= 8 fills vreg sublanes

    key = jax.random.PRNGKey(0)
    kp, kc, ki = jax.random.split(key, 3)

    params = init_params(kp, n_categories, input_size, hidden_size, output_size)
    category_seq = jax.random.normal(kc, (seq_len, batch, n_categories), jnp.float32)
    input_seq = jax.random.normal(ki, (seq_len, batch, input_size), jnp.float32)
    hidden0 = jnp.zeros((batch, hidden_size), jnp.float32)   # Net.initHidden per row

    out, h_final = net_forward_seq(category_seq, input_seq, hidden0, params)
    jax.block_until_ready((out, h_final))

    # Reference: T applications of the module's exact forward via lax.scan.
    def scan_step(h, xs):
        c, x = xs
        o, h = _ref_step(c, x, h, params)
        return h, o
    h_ref, out_ref = jax.lax.scan(scan_step, hidden0, (category_seq, input_seq))

    assert jnp.allclose(out, out_ref, atol=1e-4), "sequence output mismatch"
    assert jnp.allclose(h_final, h_ref, atol=1e-4), "final hidden mismatch"

    # Single-step path matches the module's forward exactly once as well.
    o1, h1 = net_forward(category_seq[0], input_seq[0], hidden0, params)
    o1_ref, h1_ref = _ref_step(category_seq[0], input_seq[0], hidden0, params)
    assert jnp.allclose(o1, o1_ref, atol=1e-4), "single-step output mismatch"
    assert jnp.allclose(h1, h1_ref, atol=1e-4), "single-step hidden mismatch"

    print("KERNEL_OK")
</pallas_src>

<mosaic_0001>
module attributes {stable_mosaic.version = 11 : i64} {
  func.func @kernel(%arg0: memref<8x8x12xf32, #tpu.memory_space<vmem>>, %arg1: memref<8x32xf32, #tpu.memory_space<vmem>>, %arg2: memref<12x48xf32, #tpu.memory_space<vmem>>, %arg3: memref<32x48xf32, #tpu.memory_space<vmem>>, %arg4: memref<1x48xf32, #tpu.memory_space<vmem>>, %arg5: memref<8x8x16xf32, #tpu.memory_space<vmem>>, %arg6: memref<8x32xf32, #tpu.memory_space<vmem>>) attributes {dimension_semantics = [], scalar_prefetch = 0 : i64, scratch_operands = 0 : i64, tpu.core_type = #tpu.core_type<tc>} {
    %c0 = arith.constant 0 : index
    %c0_0 = arith.constant 0 : index
    %0 = vector.load %arg2[%c0, %c0_0] : memref<12x48xf32, #tpu.memory_space<vmem>>, vector<12x48xf32>
    %c0_1 = arith.constant 0 : index
    %c0_2 = arith.constant 0 : index
    %1 = vector.load %arg3[%c0_1, %c0_2] : memref<32x48xf32, #tpu.memory_space<vmem>>, vector<32x48xf32>
    %c0_3 = arith.constant 0 : index
    %c0_4 = arith.constant 0 : index
    %2 = vector.load %arg4[%c0_3, %c0_4] : memref<1x48xf32, #tpu.memory_space<vmem>>, vector<1x48xf32>
    %c0_5 = arith.constant 0 : index
    %c0_6 = arith.constant 0 : index
    %3 = vector.load %arg1[%c0_5, %c0_6] : memref<8x32xf32, #tpu.memory_space<vmem>>, vector<8x32xf32>
    %c0_7 = arith.constant 0 : index
    %c0_8 = arith.constant 0 : index
    %c0_9 = arith.constant 0 : index
    %4 = vector.load %arg0[%c0_7, %c0_8, %c0_9] : memref<8x8x12xf32, #tpu.memory_space<vmem>>, vector<1x8x12xf32>
    %5 = vector.shape_cast %4 : vector<1x8x12xf32> to vector<8x12xf32>
    %cst = arith.constant dense<0.000000e+00> : vector<8x48xf32>
    %6 = tpu.matmul %5, %0, %cst {dimension_numbers = #tpu.dot_dimension_numbers<[1], [0], [0], [1], [0, 0, 1, 1], [], []>} : vector<8x12xf32>, vector<12x48xf32>, vector<8x48xf32> -> vector<8x48xf32>
    %cst_10 = arith.constant dense<0.000000e+00> : vector<8x48xf32>
    %7 = tpu.matmul %3, %1, %cst_10 {dimension_numbers = #tpu.dot_dimension_numbers<[1], [0], [0], [1], [0, 0, 1, 1], [], []>} : vector<8x32xf32>, vector<32x48xf32>, vector<8x48xf32> -> vector<8x48xf32>
    %8 = arith.addf %6, %7 : vector<8x48xf32>
    %9 = vector.broadcast %2 : vector<1x48xf32> to vector<8x48xf32>
    %10 = arith.addf %8, %9 : vector<8x48xf32>
    %11 = vector.extract_strided_slice %10 {offsets = [0, 0], sizes = [8, 32], strides = [1, 1]} : vector<8x48xf32> to vector<8x32xf32>
    %12 = vector.extract_strided_slice %10 {offsets = [0, 32], sizes = [8, 16], strides = [1, 1]} : vector<8x48xf32> to vector<8x16xf32>
    %cst_11 = arith.constant dense<0xFF800000> : vector<8xf32>
    %13 = vector.multi_reduction <maximumf>, %12, %cst_11 [1] : vector<8x16xf32> to vector<8xf32>
    %14 = vector.shape_cast %13 : vector<8xf32> to vector<8x1xf32>
    %15 = vector.broadcast %14 : vector<8x1xf32> to vector<8x16xf32>
    %16 = arith.subf %12, %15 : vector<8x16xf32>
    %17 = math.exp %16 : vector<8x16xf32>
    %cst_12 = arith.constant dense<0.000000e+00> : vector<8xf32>
    %18 = vector.multi_reduction <add>, %17, %cst_12 [1] : vector<8x16xf32> to vector<8xf32>
    %19 = vector.shape_cast %18 : vector<8xf32> to vector<8x1xf32>
    %20 = math.log %19 : vector<8x1xf32>
    %21 = vector.broadcast %20 : vector<8x1xf32> to vector<8x16xf32>
    %22 = arith.subf %16, %21 : vector<8x16xf32>
    %c0_13 = arith.constant 0 : index
    %c0_14 = arith.constant 0 : index
    %c0_15 = arith.constant 0 : index
    %23 = vector.load %arg5[%c0_13, %c0_14, %c0_15] : memref<8x8x16xf32, #tpu.memory_space<vmem>>, vector<1x8x16xf32>
    %24 = vector.shape_cast %23 : vector<1x8x16xf32> to vector<8x16xf32>
    %25 = vector.shape_cast %22 : vector<8x16xf32> to vector<1x8x16xf32>
    tpu.vector_store %arg5[%c0_13, %c0_14, %c0_15], %25 {strides = array<i32>} : memref<8x8x16xf32, #tpu.memory_space<vmem>>, vector<1x8x16xf32>,
    %c1 = arith.constant 1 : index
    %c0_16 = arith.constant 0 : index
    %c0_17 = arith.constant 0 : index
    %26 = vector.load %arg0[%c1, %c0_16, %c0_17] : memref<8x8x12xf32, #tpu.memory_space<vmem>>, vector<1x8x12xf32>
    %27 = vector.shape_cast %26 : vector<1x8x12xf32> to vector<8x12xf32>
    %cst_18 = arith.constant dense<0.000000e+00> : vector<8x48xf32>
    %28 = tpu.matmul %27, %0, %cst_18 {dimension_numbers = #tpu.dot_dimension_numbers<[1], [0], [0], [1], [0, 0, 1, 1], [], []>} : vector<8x12xf32>, vector<12x48xf32>, vector<8x48xf32> -> vector<8x48xf32>
    %cst_19 = arith.constant dense<0.000000e+00> : vector<8x48xf32>
    %29 = tpu.matmul %11, %1, %cst_19 {dimension_numbers = #tpu.dot_dimension_numbers<[1], [0], [0], [1], [0, 0, 1, 1], [], []>} : vector<8x32xf32>, vector<32x48xf32>, vector<8x48xf32> -> vector<8x48xf32>
    %30 = arith.addf %28, %29 : vector<8x48xf32>
    %31 = vector.broadcast %2 : vector<1x48xf32> to vector<8x48xf32>
    %32 = arith.addf %30, %31 : vector<8x48xf32>
    %33 = vector.extract_strided_slice %32 {offsets = [0, 0], sizes = [8, 32], strides = [1, 1]} : vector<8x48xf32> to vector<8x32xf32>
    %34 = vector.extract_strided_slice %32 {offsets = [0, 32], sizes = [8, 16], strides = [1, 1]} : vector<8x48xf32> to vector<8x16xf32>
    %cst_20 = arith.constant dense<0xFF800000> : vector<8xf32>
    %35 = vector.multi_reduction <maximumf>, %34, %cst_20 [1] : vector<8x16xf32> to vector<8xf32>
    %36 = vector.shape_cast %35 : vector<8xf32> to vector<8x1xf32>
    %37 = vector.broadcast %36 : vector<8x1xf32> to vector<8x16xf32>
    %38 = arith.subf %34, %37 : vector<8x16xf32>
    %39 = math.exp %38 : vector<8x16xf32>
    %cst_21 = arith.constant dense<0.000000e+00> : vector<8xf32>
    %40 = vector.multi_reduction <add>, %39, %cst_21 [1] : vector<8x16xf32> to vector<8xf32>
    %41 = vector.shape_cast %40 : vector<8xf32> to vector<8x1xf32>
    %42 = math.log %41 : vector<8x1xf32>
    %43 = vector.broadcast %42 : vector<8x1xf32> to vector<8x16xf32>
    %44 = arith.subf %38, %43 : vector<8x16xf32>
    %c1_22 = arith.constant 1 : index
    %c0_23 = arith.constant 0 : index
    %c0_24 = arith.constant 0 : index
    %45 = vector.load %arg5[%c1_22, %c0_23, %c0_24] : memref<8x8x16xf32, #tpu.memory_space<vmem>>, vector<1x8x16xf32>
    %46 = vector.shape_cast %45 : vector<1x8x16xf32> to vector<8x16xf32>
    %47 = vector.shape_cast %44 : vector<8x16xf32> to vector<1x8x16xf32>
    tpu.vector_store %arg5[%c1_22, %c0_23, %c0_24], %47 {strides = array<i32>} : memref<8x8x16xf32, #tpu.memory_space<vmem>>, vector<1x8x16xf32>,
    %c2 = arith.constant 2 : index
    %c0_25 = arith.constant 0 : index
    %c0_26 = arith.constant 0 : index
    %48 = vector.load %arg0[%c2, %c0_25, %c0_26] : memref<8x8x12xf32, #tpu.memory_space<vmem>>, vector<1x8x12xf32>
    %49 = vector.shape_cast %48 : vector<1x8x12xf32> to vector<8x12xf32>
    %cst_27 = arith.constant dense<0.000000e+00> : vector<8x48xf32>
    %50 = tpu.matmul %49, %0, %cst_27 {dimension_numbers = #tpu.dot_dimension_numbers<[1], [0], [0], [1], [0, 0, 1, 1], [], []>} : vector<8x12xf32>, vector<12x48xf32>, vector<8x48xf32> -> vector<8x48xf32>
    %cst_28 = arith.constant dense<0.000000e+00> : vector<8x48xf32>
    %51 = tpu.matmul %33, %1, %cst_28 {dimension_numbers = #tpu.dot_dimension_numbers<[1], [0], [0], [1], [0, 0, 1, 1], [], []>} : vector<8x32xf32>, vector<32x48xf32>, vector<8x48xf32> -> vector<8x48xf32>
    %52 = arith.addf %50, %51 : vector<8x48xf32>
    %53 = vector.broadcast %2 : vector<1x48xf32> to vector<8x48xf32>
    %54 = arith.addf %52, %53 : vector<8x48xf32>
    %55 = vector.extract_strided_slice %54 {offsets = [0, 0], sizes = [8, 32], strides = [1, 1]} : vector<8x48xf32> to vector<8x32xf32>
    %56 = vector.extract_strided_slice %54 {offsets = [0, 32], sizes = [8, 16], strides = [1, 1]} : vector<8x48xf32> to vector<8x16xf32>
    %cst_29 = arith.constant dense<0xFF800000> : vector<8xf32>
    %57 = vector.multi_reduction <maximumf>, %56, %cst_29 [1] : vector<8x16xf32> to vector<8xf32>
    %58 = vector.shape_cast %57 : vector<8xf32> to vector<8x1xf32>
    %59 = vector.broadcast %58 : vector<8x1xf32> to vector<8x16xf32>
    %60 = arith.subf %56, %59 : vector<8x16xf32>
    %61 = math.exp %60 : vector<8x16xf32>
    %cst_30 = arith.constant dense<0.000000e+00> : vector<8xf32>
    %62 = vector.multi_reduction <add>, %61, %cst_30 [1] : vector<8x16xf32> to vector<8xf32>
    %63 = vector.shape_cast %62 : vector<8xf32> to vector<8x1xf32>
    %64 = math.log %63 : vector<8x1xf32>
    %65 = vector.broadcast %64 : vector<8x1xf32> to vector<8x16xf32>
    %66 = arith.subf %60, %65 : vector<8x16xf32>
    %c2_31 = arith.constant 2 : index
    %c0_32 = arith.constant 0 : index
    %c0_33 = arith.constant 0 : index
    %67 = vector.load %arg5[%c2_31, %c0_32, %c0_33] : memref<8x8x16xf32, #tpu.memory_space<vmem>>, vector<1x8x16xf32>
    %68 = vector.shape_cast %67 : vector<1x8x16xf32> to vector<8x16xf32>
    %69 = vector.shape_cast %66 : vector<8x16xf32> to vector<1x8x16xf32>
    tpu.vector_store %arg5[%c2_31, %c0_32, %c0_33], %69 {strides = array<i32>} : memref<8x8x16xf32, #tpu.memory_space<vmem>>, vector<1x8x16xf32>,
    %c3 = arith.constant 3 : index
    %c0_34 = arith.constant 0 : index
    %c0_35 = arith.constant 0 : index
    %70 = vector.load %arg0[%c3, %c0_34, %c0_35] : memref<8x8x12xf32, #tpu.memory_space<vmem>>, vector<1x8x12xf32>
    %71 = vector.shape_cast %70 : vector<1x8x12xf32> to vector<8x12xf32>
    %cst_36 = arith.constant dense<0.000000e+00> : vector<8x48xf32>
    %72 = tpu.matmul %71, %0, %cst_36 {dimension_numbers = #tpu.dot_dimension_numbers<[1], [0], [0], [1], [0, 0, 1, 1], [], []>} : vector<8x12xf32>, vector<12x48xf32>, vector<8x48xf32> -> vector<8x48xf32>
    %cst_37 = arith.constant dense<0.000000e+00> : vector<8x48xf32>
    %73 = tpu.matmul %55, %1, %cst_37 {dimension_numbers = #tpu.dot_dimension_numbers<[1], [0], [0], [1], [0, 0, 1, 1], [], []>} : vector<8x32xf32>, vector<32x48xf32>, vector<8x48xf32> -> vector<8x48xf32>
    %74 = arith.addf %72, %73 : vector<8x48xf32>
    %75 = vector.broadcast %2 : vector<1x48xf32> to vector<8x48xf32>
    %76 = arith.addf %74, %75 : vector<8x48xf32>
    %77 = vector.extract_strided_slice %76 {offsets = [0, 0], sizes = [8, 32], strides = [1, 1]} : vector<8x48xf32> to vector<8x32xf32>
    %78 = vector.extract_strided_slice %76 {offsets = [0, 32], sizes = [8, 16], strides = [1, 1]} : vector<8x48xf32> to vector<8x16xf32>
    %cst_38 = arith.constant dense<0xFF800000> : vector<8xf32>
    %79 = vector.multi_reduction <maximumf>, %78, %cst_38 [1] : vector<8x16xf32> to vector<8xf32>
    %80 = vector.shape_cast %79 : vector<8xf32> to vector<8x1xf32>
    %81 = vector.broadcast %80 : vector<8x1xf32> to vector<8x16xf32>
    %82 = arith.subf %78, %81 : vector<8x16xf32>
    %83 = math.exp %82 : vector<8x16xf32>
    %cst_39 = arith.constant dense<0.000000e+00> : vector<8xf32>
    %84 = vector.multi_reduction <add>, %83, %cst_39 [1] : vector<8x16xf32> to vector<8xf32>
    %85 = vector.shape_cast %84 : vector<8xf32> to vector<8x1xf32>
    %86 = math.log %85 : vector<8x1xf32>
    %87 = vector.broadcast %86 : vector<8x1xf32> to vector<8x16xf32>
    %88 = arith.subf %82, %87 : vector<8x16xf32>
    %c3_40 = arith.constant 3 : index
    %c0_41 = arith.constant 0 : index
    %c0_42 = arith.constant 0 : index
    %89 = vector.load %arg5[%c3_40, %c0_41, %c0_42] : memref<8x8x16xf32, #tpu.memory_space<vmem>>, vector<1x8x16xf32>
    %90 = vector.shape_cast %89 : vector<1x8x16xf32> to vector<8x16xf32>
    %91 = vector.shape_cast %88 : vector<8x16xf32> to vector<1x8x16xf32>
    tpu.vector_store %arg5[%c3_40, %c0_41, %c0_42], %91 {strides = array<i32>} : memref<8x8x16xf32, #tpu.memory_space<vmem>>, vector<1x8x16xf32>,
    %c4 = arith.constant 4 : index
    %c0_43 = arith.constant 0 : index
    %c0_44 = arith.constant 0 : index
    %92 = vector.load %arg0[%c4, %c0_43, %c0_44] : memref<8x8x12xf32, #tpu.memory_space<vmem>>, vector<1x8x12xf32>
    %93 = vector.shape_cast %92 : vector<1x8x12xf32> to vector<8x12xf32>
    %cst_45 = arith.constant dense<0.000000e+00> : vector<8x48xf32>
    %94 = tpu.matmul %93, %0, %cst_45 {dimension_numbers = #tpu.dot_dimension_numbers<[1], [0], [0], [1], [0, 0, 1, 1], [], []>} : vector<8x12xf32>, vector<12x48xf32>, vector<8x48xf32> -> vector<8x48xf32>
    %cst_46 = arith.constant dense<0.000000e+00> : vector<8x48xf32>
    %95 = tpu.matmul %77, %1, %cst_46 {dimension_numbers = #tpu.dot_dimension_numbers<[1], [0], [0], [1], [0, 0, 1, 1], [], []>} : vector<8x32xf32>, vector<32x48xf32>, vector<8x48xf32> -> vector<8x48xf32>
    %96 = arith.addf %94, %95 : vector<8x48xf32>
    %97 = vector.broadcast %2 : vector<1x48xf32> to vector<8x48xf32>
    %98 = arith.addf %96, %97 : vector<8x48xf32>
    %99 = vector.extract_strided_slice %98 {offsets = [0, 0], sizes = [8, 32], strides = [1, 1]} : vector<8x48xf32> to vector<8x32xf32>
    %100 = vector.extract_strided_slice %98 {offsets = [0, 32], sizes = [8, 16], strides = [1, 1]} : vector<8x48xf32> to vector<8x16xf32>
    %cst_47 = arith.constant dense<0xFF800000> : vector<8xf32>
    %101 = vector.multi_reduction <maximumf>, %100, %cst_47 [1] : vector<8x16xf32> to vector<8xf32>
    %102 = vector.shape_cast %101 : vector<8xf32> to vector<8x1xf32>
    %103 = vector.broadcast %102 : vector<8x1xf32> to vector<8x16xf32>
    %104 = arith.subf %100, %103 : vector<8x16xf32>
    %105 = math.exp %104 : vector<8x16xf32>
    %cst_48 = arith.constant dense<0.000000e+00> : vector<8xf32>
    %106 = vector.multi_reduction <add>, %105, %cst_48 [1] : vector<8x16xf32> to vector<8xf32>
    %107 = vector.shape_cast %106 : vector<8xf32> to vector<8x1xf32>
    %108 = math.log %107 : vector<8x1xf32>
    %109 = vector.broadcast %108 : vector<8x1xf32> to vector<8x16xf32>
    %110 = arith.subf %104, %109 : vector<8x16xf32>
    %c4_49 = arith.constant 4 : index
    %c0_50 = arith.constant 0 : index
    %c0_51 = arith.constant 0 : index
    %111 = vector.load %arg5[%c4_49, %c0_50, %c0_51] : memref<8x8x16xf32, #tpu.memory_space<vmem>>, vector<1x8x16xf32>
    %112 = vector.shape_cast %111 : vector<1x8x16xf32> to vector<8x16xf32>
    %113 = vector.shape_cast %110 : vector<8x16xf32> to vector<1x8x16xf32>
    tpu.vector_store %arg5[%c4_49, %c0_50, %c0_51], %113 {strides = array<i32>} : memref<8x8x16xf32, #tpu.memory_space<vmem>>, vector<1x8x16xf32>,
    %c5 = arith.constant 5 : index
    %c0_52 = arith.constant 0 : index
    %c0_53 = arith.constant 0 : index
    %114 = vector.load %arg0[%c5, %c0_52, %c0_53] : memref<8x8x12xf32, #tpu.memory_space<vmem>>, vector<1x8x12xf32>
    %115 = vector.shape_cast %114 : vector<1x8x12xf32> to vector<8x12xf32>
    %cst_54 = arith.constant dense<0.000000e+00> : vector<8x48xf32>
    %116 = tpu.matmul %115, %0, %cst_54 {dimension_numbers = #tpu.dot_dimension_numbers<[1], [0], [0], [1], [0, 0, 1, 1], [], []>} : vector<8x12xf32>, vector<12x48xf32>, vector<8x48xf32> -> vector<8x48xf32>
    %cst_55 = arith.constant dense<0.000000e+00> : vector<8x48xf32>
    %117 = tpu.matmul %99, %1, %cst_55 {dimension_numbers = #tpu.dot_dimension_numbers<[1], [0], [0], [1], [0, 0, 1, 1], [], []>} : vector<8x32xf32>, vector<32x48xf32>, vector<8x48xf32> -> vector<8x48xf32>
    %118 = arith.addf %116, %117 : vector<8x48xf32>
    %119 = vector.broadcast %2 : vector<1x48xf32> to vector<8x48xf32>
    %120 = arith.addf %118, %119 : vector<8x48xf32>
    %121 = vector.extract_strided_slice %120 {offsets = [0, 0], sizes = [8, 32], strides = [1, 1]} : vector<8x48xf32> to vector<8x32xf32>
    %122 = vector.extract_strided_slice %120 {offsets = [0, 32], sizes = [8, 16], strides = [1, 1]} : vector<8x48xf32> to vector<8x16xf32>
    %cst_56 = arith.constant dense<0xFF800000> : vector<8xf32>
    %123 = vector.multi_reduction <maximumf>, %122, %cst_56 [1] : vector<8x16xf32> to vector<8xf32>
    %124 = vector.shape_cast %123 : vector<8xf32> to vector<8x1xf32>
    %125 = vector.broadcast %124 : vector<8x1xf32> to vector<8x16xf32>
    %126 = arith.subf %122, %125 : vector<8x16xf32>
    %127 = math.exp %126 : vector<8x16xf32>
    %cst_57 = arith.constant dense<0.000000e+00> : vector<8xf32>
    %128 = vector.multi_reduction <add>, %127, %cst_57 [1] : vector<8x16xf32> to vector<8xf32>
    %129 = vector.shape_cast %128 : vector<8xf32> to vector<8x1xf32>
    %130 = math.log %129 : vector<8x1xf32>
    %131 = vector.broadcast %130 : vector<8x1xf32> to vector<8x16xf32>
    %132 = arith.subf %126, %131 : vector<8x16xf32>
    %c5_58 = arith.constant 5 : index
    %c0_59 = arith.constant 0 : index
    %c0_60 = arith.constant 0 : index
    %133 = vector.load %arg5[%c5_58, %c0_59, %c0_60] : memref<8x8x16xf32, #tpu.memory_space<vmem>>, vector<1x8x16xf32>
    %134 = vector.shape_cast %133 : vector<1x8x16xf32> to vector<8x16xf32>
    %135 = vector.shape_cast %132 : vector<8x16xf32> to vector<1x8x16xf32>
    tpu.vector_store %arg5[%c5_58, %c0_59, %c0_60], %135 {strides = array<i32>} : memref<8x8x16xf32, #tpu.memory_space<vmem>>, vector<1x8x16xf32>,
    %c6 = arith.constant 6 : index
    %c0_61 = arith.constant 0 : index
    %c0_62 = arith.constant 0 : index
    %136 = vector.load %arg0[%c6, %c0_61, %c0_62] : memref<8x8x12xf32, #tpu.memory_space<vmem>>, vector<1x8x12xf32>
    %137 = vector.shape_cast %136 : vector<1x8x12xf32> to vector<8x12xf32>
    %cst_63 = arith.constant dense<0.000000e+00> : vector<8x48xf32>
    %138 = tpu.matmul %137, %0, %cst_63 {dimension_numbers = #tpu.dot_dimension_numbers<[1], [0], [0], [1], [0, 0, 1, 1], [], []>} : vector<8x12xf32>, vector<12x48xf32>, vector<8x48xf32> -> vector<8x48xf32>
    %cst_64 = arith.constant dense<0.000000e+00> : vector<8x48xf32>
    %139 = tpu.matmul %121, %1, %cst_64 {dimension_numbers = #tpu.dot_dimension_numbers<[1], [0], [0], [1], [0, 0, 1, 1], [], []>} : vector<8x32xf32>, vector<32x48xf32>, vector<8x48xf32> -> vector<8x48xf32>
    %140 = arith.addf %138, %139 : vector<8x48xf32>
    %141 = vector.broadcast %2 : vector<1x48xf32> to vector<8x48xf32>
    %142 = arith.addf %140, %141 : vector<8x48xf32>
    %143 = vector.extract_strided_slice %142 {offsets = [0, 0], sizes = [8, 32], strides = [1, 1]} : vector<8x48xf32> to vector<8x32xf32>
    %144 = vector.extract_strided_slice %142 {offsets = [0, 32], sizes = [8, 16], strides = [1, 1]} : vector<8x48xf32> to vector<8x16xf32>
    %cst_65 = arith.constant dense<0xFF800000> : vector<8xf32>
    %145 = vector.multi_reduction <maximumf>, %144, %cst_65 [1] : vector<8x16xf32> to vector<8xf32>
    %146 = vector.shape_cast %145 : vector<8xf32> to vector<8x1xf32>
    %147 = vector.broadcast %146 : vector<8x1xf32> to vector<8x16xf32>
    %148 = arith.subf %144, %147 : vector<8x16xf32>
    %149 = math.exp %148 : vector<8x16xf32>
    %cst_66 = arith.constant dense<0.000000e+00> : vector<8xf32>
    %150 = vector.multi_reduction <add>, %149, %cst_66 [1] : vector<8x16xf32> to vector<8xf32>
    %151 = vector.shape_cast %150 : vector<8xf32> to vector<8x1xf32>
    %152 = math.log %151 : vector<8x1xf32>
    %153 = vector.broadcast %152 : vector<8x1xf32> to vector<8x16xf32>
    %154 = arith.subf %148, %153 : vector<8x16xf32>
    %c6_67 = arith.constant 6 : index
    %c0_68 = arith.constant 0 : index
    %c0_69 = arith.constant 0 : index
    %155 = vector.load %arg5[%c6_67, %c0_68, %c0_69] : memref<8x8x16xf32, #tpu.memory_space<vmem>>, vector<1x8x16xf32>
    %156 = vector.shape_cast %155 : vector<1x8x16xf32> to vector<8x16xf32>
    %157 = vector.shape_cast %154 : vector<8x16xf32> to vector<1x8x16xf32>
    tpu.vector_store %arg5[%c6_67, %c0_68, %c0_69], %157 {strides = array<i32>} : memref<8x8x16xf32, #tpu.memory_space<vmem>>, vector<1x8x16xf32>,
    %c7 = arith.constant 7 : index
    %c0_70 = arith.constant 0 : index
    %c0_71 = arith.constant 0 : index
    %158 = vector.load %arg0[%c7, %c0_70, %c0_71] : memref<8x8x12xf32, #tpu.memory_space<vmem>>, vector<1x8x12xf32>
    %159 = vector.shape_cast %158 : vector<1x8x12xf32> to vector<8x12xf32>
    %cst_72 = arith.constant dense<0.000000e+00> : vector<8x48xf32>
    %160 = tpu.matmul %159, %0, %cst_72 {dimension_numbers = #tpu.dot_dimension_numbers<[1], [0], [0], [1], [0, 0, 1, 1], [], []>} : vector<8x12xf32>, vector<12x48xf32>, vector<8x48xf32> -> vector<8x48xf32>
    %cst_73 = arith.constant dense<0.000000e+00> : vector<8x48xf32>
    %161 = tpu.matmul %143, %1, %cst_73 {dimension_numbers = #tpu.dot_dimension_numbers<[1], [0], [0], [1], [0, 0, 1, 1], [], []>} : vector<8x32xf32>, vector<32x48xf32>, vector<8x48xf32> -> vector<8x48xf32>
    %162 = arith.addf %160, %161 : vector<8x48xf32>
    %163 = vector.broadcast %2 : vector<1x48xf32> to vector<8x48xf32>
    %164 = arith.addf %162, %163 : vector<8x48xf32>
    %165 = vector.extract_strided_slice %164 {offsets = [0, 0], sizes = [8, 32], strides = [1, 1]} : vector<8x48xf32> to vector<8x32xf32>
    %166 = vector.extract_strided_slice %164 {offsets = [0, 32], sizes = [8, 16], strides = [1, 1]} : vector<8x48xf32> to vector<8x16xf32>
    %cst_74 = arith.constant dense<0xFF800000> : vector<8xf32>
    %167 = vector.multi_reduction <maximumf>, %166, %cst_74 [1] : vector<8x16xf32> to vector<8xf32>
    %168 = vector.shape_cast %167 : vector<8xf32> to vector<8x1xf32>
    %169 = vector.broadcast %168 : vector<8x1xf32> to vector<8x16xf32>
    %170 = arith.subf %166, %169 : vector<8x16xf32>
    %171 = math.exp %170 : vector<8x16xf32>
    %cst_75 = arith.constant dense<0.000000e+00> : vector<8xf32>
    %172 = vector.multi_reduction <add>, %171, %cst_75 [1] : vector<8x16xf32> to vector<8xf32>
    %173 = vector.shape_cast %172 : vector<8xf32> to vector<8x1xf32>
    %174 = math.log %173 : vector<8x1xf32>
    %175 = vector.broadcast %174 : vector<8x1xf32> to vector<8x16xf32>
    %176 = arith.subf %170, %175 : vector<8x16xf32>
    %c7_76 = arith.constant 7 : index
    %c0_77 = arith.constant 0 : index
    %c0_78 = arith.constant 0 : index
    %177 = vector.load %arg5[%c7_76, %c0_77, %c0_78] : memref<8x8x16xf32, #tpu.memory_space<vmem>>, vector<1x8x16xf32>
    %178 = vector.shape_cast %177 : vector<1x8x16xf32> to vector<8x16xf32>
    %179 = vector.shape_cast %176 : vector<8x16xf32> to vector<1x8x16xf32>
    tpu.vector_store %arg5[%c7_76, %c0_77, %c0_78], %179 {strides = array<i32>} : memref<8x8x16xf32, #tpu.memory_space<vmem>>, vector<1x8x16xf32>,
    %c0_79 = arith.constant 0 : index
    %c0_80 = arith.constant 0 : index
    %180 = vector.load %arg6[%c0_79, %c0_80] : memref<8x32xf32, #tpu.memory_space<vmem>>, vector<8x32xf32>
    tpu.vector_store %arg6[%c0_79, %c0_80], %165 {strides = array<i32>} : memref<8x32xf32, #tpu.memory_space<vmem>>, vector<8x32xf32>,
    return
  }
}

</mosaic_0001>

<llo_original>
// kernel: tpu_custom_call.1
$region0: #{tpu_custom_call.1}
  #allocation0 [shape = 'u32[]', space=smem, size = 0x4, offset = 0x4, fixed_abs, tag = 'smem constant byte address 0x4 - core index']
  #allocation1 [shape = 'u32[72,128]{1,0:T(1,128)}', space=vmem, size = 0x9000, scoped, tag = 'internal scratch']
  %s0 = inlined_call_operand.hbm [shape: f32[8,8,12], index: 0, kind: input, shape index: {}]
  %s1 = inlined_call_operand.hbm [shape: f32[8,32], index: 1, kind: input, shape index: {}]
  %s2 = inlined_call_operand.hbm [shape: f32[12,48], index: 2, kind: input, shape index: {}]
  %s3 = inlined_call_operand.hbm [shape: f32[32,48], index: 3, kind: input, shape index: {}]
  %s4 = inlined_call_operand.vmem [shape: f32[1,48], index: 4, kind: input, shape index: {}]
  %s5 = inlined_call_operand.hbm [shape: f32[8,8,16], index: 5, kind: output, shape index: {0}]
  %s6 = inlined_call_operand.hbm [shape: f32[8,32], index: 6, kind: output, shape index: {1}]
  %7 = xla_tuple %s5, %s6
  %s8 = sld [smem:[#allocation0]]
  $region54: #{tpu_custom_call.1} parent=0
    _
  %s10 = ssub.s32 1, %s8
  %s11 = scalar_select 0, %s10, %s8
  $region1: #{tpu_custom_call.1} parent=0
    #allocation2 [shape = 'u8[32768]{0}', space=vmem, size = 0x8000, scoped, tag = 'input window, operand 0, single buffered']
    #allocation3 [shape = 's32[1]{0}', space=sflag, size = 0x4, scoped, tag = 'scoped memory for tpu_custom_call.1']
    #allocation4 [shape = 's32[1]{0}', space=sflag, size = 0x4, scoped, tag = 'scoped memory for tpu_custom_call.1']
    #allocation5 [shape = 'u8[4096]{0}', space=vmem, size = 0x1000, scoped, tag = 'input window, operand 1, single buffered']
    #allocation6 [shape = 's32[1]{0}', space=sflag, size = 0x4, scoped, tag = 'scoped memory for tpu_custom_call.1']
    #allocation7 [shape = 'u8[8192]{0}', space=vmem, size = 0x2000, scoped, tag = 'input window, operand 2, single buffered']
    #allocation8 [shape = 'u8[16384]{0}', space=vmem, size = 0x4000, scoped, tag = 'input window, operand 3, single buffered']
    #allocation9 [shape = 's32[1]{0}', space=sflag, size = 0x4, scoped, tag = 'scoped memory for tpu_custom_call.1']
    #allocation10 [shape = 'u8[32768]{0}', space=vmem, size = 0x8000, scoped, tag = 'output window, operand 0, single buffered']
    #allocation11 [shape = 'u8[4096]{0}', space=vmem, size = 0x1000, scoped, tag = 'output window, operand 1, single buffered']
    #allocation12 [shape = 's32[1]{0}', space=sflag, size = 0x4, scoped, tag = 'scoped memory for tpu_custom_call.1']
    %12 = vsyncpa [#allocation3], 0
    %13 = vsyncpa [#allocation6], 0
    %14 = vsyncpa [#allocation9], 0
    %15 = vsyncpa [#allocation4], 0
    %16 = vsyncpa [#allocation12], 0
    // Predicated region
    $region2: #{tpu_custom_call.1} parent=1 // pred_check
      _
    $region3: #{tpu_custom_call.1} parent=1 // pred_check_branch
      %18 = sbr.rel (0) target = $region5
    $region4: #{tpu_custom_call.1} parent=1 // pred_region
      %20 = vsyncadd [#allocation3], 0
      %s21 = sshll.u32 %s0, 4
      %s22 = int_to_ptr.hbm [resolvable:$true] %s21
      %s23 = sshll.u32 [#allocation2], 4
      %s24 = int_to_ptr.vmem [resolvable:$true] %s23
      %29 = dma.hbm_to_vmem [thread:$0]  %s22, 1024, %s24, [#allocation3], 128, 128, 8
    $region5: #{tpu_custom_call.1} parent=1 // pred_fallthru
      _
    // Predicated region
    $region6: #{tpu_custom_call.1} parent=1 // pred_check
      _
    $region7: #{tpu_custom_call.1} parent=1 // pred_check_branch
      %31 = sbr.rel (0) target = $region9
    $region8: #{tpu_custom_call.1} parent=1 // pred_region
      %33 = vsyncadd [#allocation6], 0
      %s35 = sshll.u32 %s1, 4
      %s36 = int_to_ptr.hbm [resolvable:$true] %s35
      %s37 = sshll.u32 [#allocation5], 4
      %s38 = int_to_ptr.vmem [resolvable:$true] %s37
      %40 = dma.hbm_to_vmem [thread:$0]  %s36, 128, %s38, [#allocation6]
    $region9: #{tpu_custom_call.1} parent=1 // pred_fallthru
      _
    // Predicated region
    $region10: #{tpu_custom_call.1} parent=1 // pred_check
      _
    $region11: #{tpu_custom_call.1} parent=1 // pred_check_branch
      %42 = sbr.rel (0) target = $region13
    $region12: #{tpu_custom_call.1} parent=1 // pred_region
      %44 = vsyncadd [#allocation6], 0
      %s45 = sshll.u32 %s2, 4
      %s46 = int_to_ptr.hbm [resolvable:$true] %s45
      %s47 = sshll.u32 [#allocation7], 4
      %s48 = int_to_ptr.vmem [resolvable:$true] %s47
      %53 = dma.hbm_to_vmem [thread:$0]  %s46, 256, %s48, [#allocation6], 128, 128, 8
    $region13: #{tpu_custom_call.1} parent=1 // pred_fallthru
      _
    // Predicated region
    $region14: #{tpu_custom_call.1} parent=1 // pred_check
      _
    $region15: #{tpu_custom_call.1} parent=1 // pred_check_branch
      %55 = sbr.rel (0) target = $region17
    $region16: #{tpu_custom_call.1} parent=1 // pred_region
      %57 = vsyncadd [#allocation9], 0
      %s58 = sshll.u32 %s3, 4
      %s59 = int_to_ptr.hbm [resolvable:$true] %s58
      %s60 = sshll.u32 [#allocation8], 4
      %s61 = int_to_ptr.vmem [resolvable:$true] %s60
      %66 = dma.hbm_to_vmem [thread:$0]  %s59, 512, %s61, [#allocation9], 128, 128, 8
    $region17: #{tpu_custom_call.1} parent=1 // pred_fallthru
      _
    // Predicated region
    $region18: #{tpu_custom_call.1} parent=1 // pred_check
      _
    $region19: #{tpu_custom_call.1} parent=1 // pred_check_branch
      %68 = sbr.rel (0) target = $region21
    $region20: #{tpu_custom_call.1} parent=1 // pred_region
      _
    $region21: #{tpu_custom_call.1} parent=1 // pred_fallthru
      _
    // Predicated region
    $region22: #{tpu_custom_call.1} parent=1 // pred_check
      _
    $region23: #{tpu_custom_call.1} parent=1 // pred_check_branch
      %70 = sbr.rel (0) target = $region25
    $region24: #{tpu_custom_call.1} parent=1 // pred_region
      %72 = dma.done [#allocation3], 1024
    $region25: #{tpu_custom_call.1} parent=1 // pred_fallthru
      _
    // Predicated region
    $region26: #{tpu_custom_call.1} parent=1 // pred_check
      _
    $region27: #{tpu_custom_call.1} parent=1 // pred_check_branch
      %74 = sbr.rel (0) target = $region29
    $region28: #{tpu_custom_call.1} parent=1 // pred_region
      %76 = dma.done [#allocation6], 128
    $region29: #{tpu_custom_call.1} parent=1 // pred_fallthru
      _
    // Predicated region
    $region30: #{tpu_custom_call.1} parent=1 // pred_check
      _
    $region31: #{tpu_custom_call.1} parent=1 // pred_check_branch
      %78 = sbr.rel (0) target = $region33
    $region32: #{tpu_custom_call.1} parent=1 // pred_region
      %80 = dma.done [#allocation6], 256
    $region33: #{tpu_custom_call.1} parent=1 // pred_fallthru
      _
    // Predicated region
    $region34: #{tpu_custom_call.1} parent=1 // pred_check
      _
    $region35: #{tpu_custom_call.1} parent=1 // pred_check_branch
      %82 = sbr.rel (0) target = $region37
    $region36: #{tpu_custom_call.1} parent=1 // pred_region
      %84 = dma.done [#allocation9], 512
    $region37: #{tpu_custom_call.1} parent=1 // pred_fallthru
      _
    %v85 = vld [vmem:[#allocation7] sm:$0xff]
    %v86 = vld [vmem:[#allocation7 + $0x8] sm:$0xf]
    %v87 = vld [vmem:[#allocation8] sm:$0xff]
    %v88 = vld [vmem:[#allocation8 + $0x8] sm:$0xff]
    %v89 = vld [vmem:[#allocation8 + $0x10] sm:$0xff]
    %v90 = vld [vmem:[#allocation8 + $0x18] sm:$0xff]
    %v91 = vld [vmem:[%s4] sm:$0x1]
    %v92 = vld [vmem:[#allocation5] sm:$0xff]
    %v93 = vld [vmem:[#allocation2] sm:$0xff]
    %vm94 = vcmask 261120
    %v96 = vsel %vm94, %v92, 0
    %98 = vmatpush.msra.mxu0 0.0
    %99 = vmatpush.msra.mxu0 0.0
    %100 = vmatpush.msra.mxu0 0.0
    %101 = vmatpush.msra.mxu0 0.0
    %102 = vmatpush.msra.mxu0 0.0
    %103 = vmatpush.msra.mxu0 0.0
    %104 = vmatpush.msra.mxu0 0.0
    %105 = vmatpush.msra.mxu0 0.0
    %106 = vmatpush.msra.mxu0 0.0
    %107 = vmatpush.msra.mxu0 0.0
    %108 = vmatpush.msra.mxu0 0.0
    %109 = vmatpush.msra.mxu0 0.0
    %110 = vmatpush.msra.mxu0 %v90
    %111 = vmatpush.msra.mxu0 %v89
    %112 = vmatpush.msra.mxu0 %v88
    %113 = vmatpush.msra.mxu0 %v87
    %114 = vmatmul.f32.gmra.mxu0 %v96
    %v115 = vpop.f32.mrf.mxu0
    %v116 = vadd.f32 0.0, %v115
    %117 = vdwg.mxu0
    %vm118 = vcmask 97280
    %v120 = vsel %vm118, %v93, 0
    %vm122 = vcmask 1043456
    %v124 = vsel %vm122, %v86, 0
    %126 = vmatpush.msra.mxu0 0.0
    %127 = vmatpush.msra.mxu0 0.0
    %128 = vmatpush.msra.mxu0 0.0
    %129 = vmatpush.msra.mxu0 0.0
    %130 = vmatpush.msra.mxu0 0.0
    %131 = vmatpush.msra.mxu0 0.0
    %132 = vmatpush.msra.mxu0 0.0
    %133 = vmatpush.msra.mxu0 0.0
    %134 = vmatpush.msra.mxu0 0.0
    %135 = vmatpush.msra.mxu0 0.0
    %136 = vmatpush.msra.mxu0 0.0
    %137 = vmatpush.msra.mxu0 0.0
    %138 = vmatpush.msra.mxu0 0.0
    %139 = vmatpush.msra.mxu0 0.0
    %140 = vmatpush.msra.mxu0 %v124
    %141 = vmatpush.msra.mxu0 %v85
    %142 = vmatmul.f32.gmra.mxu0 %v120
    %v143 = vpop.f32.mrf.mxu0
    %v144 = vadd.f32 %v116, %v143
    %145 = vdwg.mxu0
    %v147 = vperm.slane %v91, 0
    %v149 = vadd.f32 %v144, %v147
    %vm150 = vcmask 392448
    %v151 = vsel %vm150, %v149, -inf
    %152 = vmax.xlane.f32.xlu0 %v151
    %v153 = vpop.xlane.xlu0 %152
    %v154 = vsub.f32 %v149, %v153
    %v155 = vmul.f32 %v154, 1.442695
    %v156 = vpow.pop %v155
    %158 = vrot.lane.b32.xlu0 %v156, 96
    %v159 = vpop.permute.xlu0 %158
    %vm161 = vcmask 130048
    %v162 = vsel %vm161, %v159, 0.0
    %163 = vadd.xlane.f32.xlu0 %v162
    %v164 = vpop.xlane.xlu0 %163
    %v165 = vlog2.pop %v164
    %v166 = vmul.f32 %v165, 0.6931472
    %v167 = vsub.f32 %v154, %v166
    %169 = vrot.lane.b32.xlu0 %v167, 96
    %v170 = vpop.permute.xlu0 %169
    %172 = vst.msk [vmem:[#allocation10] sm:$0xff] %vm161, %v170
    %s173 = scalar_lea.vmem [#allocation2], 8
    %v174 = vld [vmem:[%s173] sm:$0xff]
    %v176 = vsel %vm94, %v149, 0
    %178 = vmatpush.msra.mxu0 0.0
    %179 = vmatpush.msra.mxu0 0.0
    %180 = vmatpush.msra.mxu0 0.0
    %181 = vmatpush.msra.mxu0 0.0
    %182 = vmatpush.msra.mxu0 0.0
    %183 = vmatpush.msra.mxu0 0.0
    %184 = vmatpush.msra.mxu0 0.0
    %185 = vmatpush.msra.mxu0 0.0
    %186 = vmatpush.msra.mxu0 0.0
    %187 = vmatpush.msra.mxu0 0.0
    %188 = vmatpush.msra.mxu0 0.0
    %189 = vmatpush.msra.mxu0 0.0
    %190 = vmatpush.msra.mxu0 %v90
    %191 = vmatpush.msra.mxu0 %v89
    %192 = vmatpush.msra.mxu0 %v88
    %193 = vmatpush.msra.mxu0 %v87
    %194 = vmatmul.f32.gmra.mxu0 %v176
    %v195 = vpop.f32.mrf.mxu0
    %v196 = vadd.f32 0.0, %v195
    %197 = vdwg.mxu0
    %v199 = vsel %vm118, %v174, 0
    %201 = vmatpush.msra.mxu0 0.0
    %202 = vmatpush.msra.mxu0 0.0
    %203 = vmatpush.msra.mxu0 0.0
    %204 = vmatpush.msra.mxu0 0.0
    %205 = vmatpush.msra.mxu0 0.0
    %206 = vmatpush.msra.mxu0 0.0
    %207 = vmatpush.msra.mxu0 0.0
    %208 = vmatpush.msra.mxu0 0.0
    %209 = vmatpush.msra.mxu0 0.0
    %210 = vmatpush.msra.mxu0 0.0
    %211 = vmatpush.msra.mxu0 0.0
    %212 = vmatpush.msra.mxu0 0.0
    %213 = vmatpush.msra.mxu0 0.0
    %214 = vmatpush.msra.mxu0 0.0
    %215 = vmatpush.msra.mxu0 %v124
    %216 = vmatpush.msra.mxu0 %v85
    %217 = vmatmul.f32.gmra.mxu0 %v199
    %v218 = vpop.f32.mrf.mxu0
    %v219 = vadd.f32 %v196, %v218
    %220 = vdwg.mxu0
    %v221 = vadd.f32 %v219, %v147
    %v222 = vsel %vm150, %v221, -inf
    %223 = vmax.xlane.f32.xlu0 %v222
    %v224 = vpop.xlane.xlu0 %223
    %v225 = vsub.f32 %v221, %v224
    %v226 = vmul.f32 %v225, 1.442695
    %v227 = vpow.pop %v226
    %229 = vrot.lane.b32.xlu0 %v227, 96
    %v230 = vpop.permute.xlu0 %229
    %v232 = vsel %vm161, %v230, 0.0
    %233 = vadd.xlane.f32.xlu0 %v232
    %v234 = vpop.xlane.xlu0 %233
    %v235 = vlog2.pop %v234
    %v236 = vmul.f32 %v235, 0.6931472
    %v237 = vsub.f32 %v225, %v236
    %239 = vrot.lane.b32.xlu0 %v237, 96
    %v240 = vpop.permute.xlu0 %239
    %s242 = scalar_lea.vmem [#allocation10], 8
    %243 = vst.msk [vmem:[%s242] sm:$0xff] %vm161, %v240
    %s244 = scalar_lea.vmem [#allocation2], 16
    %v245 = vld [vmem:[%s244] sm:$0xff]
    %v247 = vsel %vm94, %v221, 0
    %249 = vmatpush.msra.mxu0 0.0
    %250 = vmatpush.msra.mxu0 0.0
    %251 = vmatpush.msra.mxu0 0.0
    %252 = vmatpush.msra.mxu0 0.0
    %253 = vmatpush.msra.mxu0 0.0
    %254 = vmatpush.msra.mxu0 0.0
    %255 = vmatpush.msra.mxu0 0.0
    %256 = vmatpush.msra.mxu0 0.0
    %257 = vmatpush.msra.mxu0 0.0
    %258 = vmatpush.msra.mxu0 0.0
    %259 = vmatpush.msra.mxu0 0.0
    %260 = vmatpush.msra.mxu0 0.0
    %261 = vmatpush.msra.mxu0 %v90
    %262 = vmatpush.msra.mxu0 %v89
    %263 = vmatpush.msra.mxu0 %v88
    %264 = vmatpush.msra.mxu0 %v87
    %265 = vmatmul.f32.gmra.mxu0 %v247
    %v266 = vpop.f32.mrf.mxu0
    %v267 = vadd.f32 0.0, %v266
    %268 = vdwg.mxu0
    %v270 = vsel %vm118, %v245, 0
    %272 = vmatpush.msra.mxu0 0.0
    %273 = vmatpush.msra.mxu0 0.0
    %274 = vmatpush.msra.mxu0 0.0
    %275 = vmatpush.msra.mxu0 0.0
    %276 = vmatpush.msra.mxu0 0.0
    %277 = vmatpush.msra.mxu0 0.0
    %278 = vmatpush.msra.mxu0 0.0
    %279 = vmatpush.msra.mxu0 0.0
    %280 = vmatpush.msra.mxu0 0.0
    %281 = vmatpush.msra.mxu0 0.0
    %282 = vmatpush.msra.mxu0 0.0
    %283 = vmatpush.msra.mxu0 0.0
    %284 = vmatpush.msra.mxu0 0.0
    %285 = vmatpush.msra.mxu0 0.0
    %286 = vmatpush.msra.mxu0 %v124
    %287 = vmatpush.msra.mxu0 %v85
    %288 = vmatmul.f32.gmra.mxu0 %v270
    %v289 = vpop.f32.mrf.mxu0
    %v290 = vadd.f32 %v267, %v289
    %291 = vdwg.mxu0
    %v292 = vadd.f32 %v290, %v147
    %v293 = vsel %vm150, %v292, -inf
    %294 = vmax.xlane.f32.xlu0 %v293
    %v295 = vpop.xlane.xlu0 %294
    %v296 = vsub.f32 %v292, %v295
    %v297 = vmul.f32 %v296, 1.442695
    %v298 = vpow.pop %v297
    %300 = vrot.lane.b32.xlu0 %v298, 96
    %v301 = vpop.permute.xlu0 %300
    %v303 = vsel %vm161, %v301, 0.0
    %304 = vadd.xlane.f32.xlu0 %v303
    %v305 = vpop.xlane.xlu0 %304
    %v306 = vlog2.pop %v305
    %v307 = vmul.f32 %v306, 0.6931472
    %v308 = vsub.f32 %v296, %v307
    %310 = vrot.lane.b32.xlu0 %v308, 96
    %v311 = vpop.permute.xlu0 %310
    %s313 = scalar_lea.vmem [#allocation10], 16
    %314 = vst.msk [vmem:[%s313] sm:$0xff] %vm161, %v311
    %s315 = scalar_lea.vmem [#allocation2], 24
    %v316 = vld [vmem:[%s315] sm:$0xff]
    %v318 = vsel %vm94, %v292, 0
    %320 = vmatpush.msra.mxu0 0.0
    %321 = vmatpush.msra.mxu0 0.0
    %322 = vmatpush.msra.mxu0 0.0
    %323 = vmatpush.msra.mxu0 0.0
    %324 = vmatpush.msra.mxu0 0.0
    %325 = vmatpush.msra.mxu0 0.0
    %326 = vmatpush.msra.mxu0 0.0
    %327 = vmatpush.msra.mxu0 0.0
    %328 = vmatpush.msra.mxu0 0.0
    %329 = vmatpush.msra.mxu0 0.0
    %330 = vmatpush.msra.mxu0 0.0
    %331 = vmatpush.msra.mxu0 0.0
    %332 = vmatpush.msra.mxu0 %v90
    %333 = vmatpush.msra.mxu0 %v89
    %334 = vmatpush.msra.mxu0 %v88
    %335 = vmatpush.msra.mxu0 %v87
    %336 = vmatmul.f32.gmra.mxu0 %v318
    %v337 = vpop.f32.mrf.mxu0
    %v338 = vadd.f32 0.0, %v337
    %339 = vdwg.mxu0
    %v341 = vsel %vm118, %v316, 0
    %343 = vmatpush.msra.mxu0 0.0
    %344 = vmatpush.msra.mxu0 0.0
    %345 = vmatpush.msra.mxu0 0.0
    %346 = vmatpush.msra.mxu0 0.0
    %347 = vmatpush.msra.mxu0 0.0
    %348 = vmatpush.msra.mxu0 0.0
    %349 = vmatpush.msra.mxu0 0.0
    %350 = vmatpush.msra.mxu0 0.0
    %351 = vmatpush.msra.mxu0 0.0
    %352 = vmatpush.msra.mxu0 0.0
    %353 = vmatpush.msra.mxu0 0.0
    %354 = vmatpush.msra.mxu0 0.0
    %355 = vmatpush.msra.mxu0 0.0
    %356 = vmatpush.msra.mxu0 0.0
    %357 = vmatpush.msra.mxu0 %v124
    %358 = vmatpush.msra.mxu0 %v85
    %359 = vmatmul.f32.gmra.mxu0 %v341
    %v360 = vpop.f32.mrf.mxu0
    %v361 = vadd.f32 %v338, %v360
    %362 = vdwg.mxu0
    %v363 = vadd.f32 %v361, %v147
    %v364 = vsel %vm150, %v363, -inf
    %365 = vmax.xlane.f32.xlu0 %v364
    %v366 = vpop.xlane.xlu0 %365
    %v367 = vsub.f32 %v363, %v366
    %v368 = vmul.f32 %v367, 1.442695
    %v369 = vpow.pop %v368
    %371 = vrot.lane.b32.xlu0 %v369, 96
    %v372 = vpop.permute.xlu0 %371
    %v374 = vsel %vm161, %v372, 0.0
    %375 = vadd.xlane.f32.xlu0 %v374
    %v376 = vpop.xlane.xlu0 %375
    %v377 = vlog2.pop %v376
    %v378 = vmul.f32 %v377, 0.6931472
    %v379 = vsub.f32 %v367, %v378
    %381 = vrot.lane.b32.xlu0 %v379, 96
    %v382 = vpop.permute.xlu0 %381
    %s384 = scalar_lea.vmem [#allocation10], 24
    %385 = vst.msk [vmem:[%s384] sm:$0xff] %vm161, %v382
    %s386 = scalar_lea.vmem [#allocation2], 32
    %v387 = vld [vmem:[%s386] sm:$0xff]
    %v389 = vsel %vm94, %v363, 0
    %391 = vmatpush.msra.mxu0 0.0
    %392 = vmatpush.msra.mxu0 0.0
    %393 = vmatpush.msra.mxu0 0.0
    %394 = vmatpush.msra.mxu0 0.0
    %395 = vmatpush.msra.mxu0 0.0
    %396 = vmatpush.msra.mxu0 0.0
    %397 = vmatpush.msra.mxu0 0.0
    %398 = vmatpush.msra.mxu0 0.0
    %399 = vmatpush.msra.mxu0 0.0
    %400 = vmatpush.msra.mxu0 0.0
    %401 = vmatpush.msra.mxu0 0.0
    %402 = vmatpush.msra.mxu0 0.0
    %403 = vmatpush.msra.mxu0 %v90
    %404 = vmatpush.msra.mxu0 %v89
    %405 = vmatpush.msra.mxu0 %v88
    %406 = vmatpush.msra.mxu0 %v87
    %407 = vmatmul.f32.gmra.mxu0 %v389
    %v408 = vpop.f32.mrf.mxu0
    %v409 = vadd.f32 0.0, %v408
    %410 = vdwg.mxu0
    %v412 = vsel %vm118, %v387, 0
    %414 = vmatpush.msra.mxu0 0.0
    %415 = vmatpush.msra.mxu0 0.0
    %416 = vmatpush.msra.mxu0 0.0
    %417 = vmatpush.msra.mxu0 0.0
    %418 = vmatpush.msra.mxu0 0.0
    %419 = vmatpush.msra.mxu0 0.0
    %420 = vmatpush.msra.mxu0 0.0
    %421 = vmatpush.msra.mxu0 0.0
    %422 = vmatpush.msra.mxu0 0.0
    %423 = vmatpush.msra.mxu0 0.0
    %424 = vmatpush.msra.mxu0 0.0
    %425 = vmatpush.msra.mxu0 0.0
    %426 = vmatpush.msra.mxu0 0.0
    %427 = vmatpush.msra.mxu0 0.0
    %428 = vmatpush.msra.mxu0 %v124
    %429 = vmatpush.msra.mxu0 %v85
    %430 = vmatmul.f32.gmra.mxu0 %v412
    %v431 = vpop.f32.mrf.mxu0
    %v432 = vadd.f32 %v409, %v431
    %433 = vdwg.mxu0
    %v434 = vadd.f32 %v432, %v147
    %v435 = vsel %vm150, %v434, -inf
    %436 = vmax.xlane.f32.xlu0 %v435
    %v437 = vpop.xlane.xlu0 %436
    %v438 = vsub.f32 %v434, %v437
    %v439 = vmul.f32 %v438, 1.442695
    %v440 = vpow.pop %v439
    %442 = vrot.lane.b32.xlu0 %v440, 96
    %v443 = vpop.permute.xlu0 %442
    %v445 = vsel %vm161, %v443, 0.0
    %446 = vadd.xlane.f32.xlu0 %v445
    %v447 = vpop.xlane.xlu0 %446
    %v448 = vlog2.pop %v447
    %v449 = vmul.f32 %v448, 0.6931472
    %v450 = vsub.f32 %v438, %v449
    %452 = vrot.lane.b32.xlu0 %v450, 96
    %v453 = vpop.permute.xlu0 %452
    %s455 = scalar_lea.vmem [#allocation10], 32
    %456 = vst.msk [vmem:[%s455] sm:$0xff] %vm161, %v453
    %s457 = scalar_lea.vmem [#allocation2], 40
    %v458 = vld [vmem:[%s457] sm:$0xff]
    %v460 = vsel %vm94, %v434, 0
    %462 = vmatpush.msra.mxu0 0.0
    %463 = vmatpush.msra.mxu0 0.0
    %464 = vmatpush.msra.mxu0 0.0
    %465 = vmatpush.msra.mxu0 0.0
    %466 = vmatpush.msra.mxu0 0.0
    %467 = vmatpush.msra.mxu0 0.0
    %468 = vmatpush.msra.mxu0 0.0
    %469 = vmatpush.msra.mxu0 0.0
    %470 = vmatpush.msra.mxu0 0.0
    %471 = vmatpush.msra.mxu0 0.0
    %472 = vmatpush.msra.mxu0 0.0
    %473 = vmatpush.msra.mxu0 0.0
    %474 = vmatpush.msra.mxu0 %v90
    %475 = vmatpush.msra.mxu0 %v89
    %476 = vmatpush.msra.mxu0 %v88
    %477 = vmatpush.msra.mxu0 %v87
    %478 = vmatmul.f32.gmra.mxu0 %v460
    %v479 = vpop.f32.mrf.mxu0
    %v480 = vadd.f32 0.0, %v479
    %481 = vdwg.mxu0
    %v483 = vsel %vm118, %v458, 0
    %485 = vmatpush.msra.mxu0 0.0
    %486 = vmatpush.msra.mxu0 0.0
    %487 = vmatpush.msra.mxu0 0.0
    %488 = vmatpush.msra.mxu0 0.0
    %489 = vmatpush.msra.mxu0 0.0
    %490 = vmatpush.msra.mxu0 0.0
    %491 = vmatpush.msra.mxu0 0.0
    %492 = vmatpush.msra.mxu0 0.0
    %493 = vmatpush.msra.mxu0 0.0
    %494 = vmatpush.msra.mxu0 0.0
    %495 = vmatpush.msra.mxu0 0.0
    %496 = vmatpush.msra.mxu0 0.0
    %497 = vmatpush.msra.mxu0 0.0
    %498 = vmatpush.msra.mxu0 0.0
    %499 = vmatpush.msra.mxu0 %v124
    %500 = vmatpush.msra.mxu0 %v85
    %501 = vmatmul.f32.gmra.mxu0 %v483
    %v502 = vpop.f32.mrf.mxu0
    %v503 = vadd.f32 %v480, %v502
    %504 = vdwg.mxu0
    %v505 = vadd.f32 %v503, %v147
    %v506 = vsel %vm150, %v505, -inf
    %507 = vmax.xlane.f32.xlu0 %v506
    %v508 = vpop.xlane.xlu0 %507
    %v509 = vsub.f32 %v505, %v508
    %v510 = vmul.f32 %v509, 1.442695
    %v511 = vpow.pop %v510
    %513 = vrot.lane.b32.xlu0 %v511, 96
    %v514 = vpop.permute.xlu0 %513
    %v516 = vsel %vm161, %v514, 0.0
    %517 = vadd.xlane.f32.xlu0 %v516
    %v518 = vpop.xlane.xlu0 %517
    %v519 = vlog2.pop %v518
    %v520 = vmul.f32 %v519, 0.6931472
    %v521 = vsub.f32 %v509, %v520
    %523 = vrot.lane.b32.xlu0 %v521, 96
    %v524 = vpop.permute.xlu0 %523
    %s526 = scalar_lea.vmem [#allocation10], 40
    %527 = vst.msk [vmem:[%s526] sm:$0xff] %vm161, %v524
    %s528 = scalar_lea.vmem [#allocation2], 48
    %v529 = vld [vmem:[%s528] sm:$0xff]
    %v531 = vsel %vm94, %v505, 0
    %533 = vmatpush.msra.mxu0 0.0
    %534 = vmatpush.msra.mxu0 0.0
    %535 = vmatpush.msra.mxu0 0.0
    %536 = vmatpush.msra.mxu0 0.0
    %537 = vmatpush.msra.mxu0 0.0
    %538 = vmatpush.msra.mxu0 0.0
    %539 = vmatpush.msra.mxu0 0.0
    %540 = vmatpush.msra.mxu0 0.0
    %541 = vmatpush.msra.mxu0 0.0
    %542 = vmatpush.msra.mxu0 0.0
    %543 = vmatpush.msra.mxu0 0.0
    %544 = vmatpush.msra.mxu0 0.0
    %545 = vmatpush.msra.mxu0 %v90
    %546 = vmatpush.msra.mxu0 %v89
    %547 = vmatpush.msra.mxu0 %v88
    %548 = vmatpush.msra.mxu0 %v87
    %549 = vmatmul.f32.gmra.mxu0 %v531
    %v550 = vpop.f32.mrf.mxu0
    %v551 = vadd.f32 0.0, %v550
    %552 = vdwg.mxu0
    %v554 = vsel %vm118, %v529, 0
    %556 = vmatpush.msra.mxu0 0.0
    %557 = vmatpush.msra.mxu0 0.0
    %558 = vmatpush.msra.mxu0 0.0
    %559 = vmatpush.msra.mxu0 0.0
    %560 = vmatpush.msra.mxu0 0.0
    %561 = vmatpush.msra.mxu0 0.0
    %562 = vmatpush.msra.mxu0 0.0
    %563 = vmatpush.msra.mxu0 0.0
    %564 = vmatpush.msra.mxu0 0.0
    %565 = vmatpush.msra.mxu0 0.0
    %566 = vmatpush.msra.mxu0 0.0
    %567 = vmatpush.msra.mxu0 0.0
    %568 = vmatpush.msra.mxu0 0.0
    %569 = vmatpush.msra.mxu0 0.0
    %570 = vmatpush.msra.mxu0 %v124
    %571 = vmatpush.msra.mxu0 %v85
    %572 = vmatmul.f32.gmra.mxu0 %v554
    %v573 = vpop.f32.mrf.mxu0
    %v574 = vadd.f32 %v551, %v573
    %575 = vdwg.mxu0
    %v576 = vadd.f32 %v574, %v147
    %v577 = vsel %vm150, %v576, -inf
    %578 = vmax.xlane.f32.xlu0 %v577
    %v579 = vpop.xlane.xlu0 %578
    %v580 = vsub.f32 %v576, %v579
    %v581 = vmul.f32 %v580, 1.442695
    %v582 = vpow.pop %v581
    %584 = vrot.lane.b32.xlu0 %v582, 96
    %v585 = vpop.permute.xlu0 %584
    %v587 = vsel %vm161, %v585, 0.0
    %588 = vadd.xlane.f32.xlu0 %v587
    %v589 = vpop.xlane.xlu0 %588
    %v590 = vlog2.pop %v589
    %v591 = vmul.f32 %v590, 0.6931472
    %v592 = vsub.f32 %v580, %v591
    %594 = vrot.lane.b32.xlu0 %v592, 96
    %v595 = vpop.permute.xlu0 %594
    %s597 = scalar_lea.vmem [#allocation10], 48
    %598 = vst.msk [vmem:[%s597] sm:$0xff] %vm161, %v595
    %s599 = scalar_lea.vmem [#allocation2], 56
    %v600 = vld [vmem:[%s599] sm:$0xff]
    %v602 = vsel %vm94, %v576, 0
    %604 = vmatpush.msra.mxu0 0.0
    %605 = vmatpush.msra.mxu0 0.0
    %606 = vmatpush.msra.mxu0 0.0
    %607 = vmatpush.msra.mxu0 0.0
    %608 = vmatpush.msra.mxu0 0.0
    %609 = vmatpush.msra.mxu0 0.0
    %610 = vmatpush.msra.mxu0 0.0
    %611 = vmatpush.msra.mxu0 0.0
    %612 = vmatpush.msra.mxu0 0.0
    %613 = vmatpush.msra.mxu0 0.0
    %614 = vmatpush.msra.mxu0 0.0
    %615 = vmatpush.msra.mxu0 0.0
    %616 = vmatpush.msra.mxu0 %v90
    %617 = vmatpush.msra.mxu0 %v89
    %618 = vmatpush.msra.mxu0 %v88
    %619 = vmatpush.msra.mxu0 %v87
    %620 = vmatmul.f32.gmra.mxu0 %v602
    %v621 = vpop.f32.mrf.mxu0
    %v622 = vadd.f32 0.0, %v621
    %623 = vdwg.mxu0
    %v625 = vsel %vm118, %v600, 0
    %627 = vmatpush.msra.mxu0 0.0
    %628 = vmatpush.msra.mxu0 0.0
    %629 = vmatpush.msra.mxu0 0.0
    %630 = vmatpush.msra.mxu0 0.0
    %631 = vmatpush.msra.mxu0 0.0
    %632 = vmatpush.msra.mxu0 0.0
    %633 = vmatpush.msra.mxu0 0.0
    %634 = vmatpush.msra.mxu0 0.0
    %635 = vmatpush.msra.mxu0 0.0
    %636 = vmatpush.msra.mxu0 0.0
    %637 = vmatpush.msra.mxu0 0.0
    %638 = vmatpush.msra.mxu0 0.0
    %639 = vmatpush.msra.mxu0 0.0
    %640 = vmatpush.msra.mxu0 0.0
    %641 = vmatpush.msra.mxu0 %v124
    %642 = vmatpush.msra.mxu0 %v85
    %643 = vmatmul.f32.gmra.mxu0 %v625
    %v644 = vpop.f32.mrf.mxu0
    %v645 = vadd.f32 %v622, %v644
    %646 = vdwg.mxu0
    %v647 = vadd.f32 %v645, %v147
    %v648 = vsel %vm150, %v647, -inf
    %649 = vmax.xlane.f32.xlu0 %v648
    %v650 = vpop.xlane.xlu0 %649
    %v651 = vsub.f32 %v647, %v650
    %v652 = vmul.f32 %v651, 1.442695
    %v653 = vpow.pop %v652
    %655 = vrot.lane.b32.xlu0 %v653, 96
    %v656 = vpop.permute.xlu0 %655
    %v658 = vsel %vm161, %v656, 0.0
    %659 = vadd.xlane.f32.xlu0 %v658
    %v660 = vpop.xlane.xlu0 %659
    %v661 = vlog2.pop %v660
    %v662 = vmul.f32 %v661, 0.6931472
    %v663 = vsub.f32 %v651, %v662
    %665 = vrot.lane.b32.xlu0 %v663, 96
    %v666 = vpop.permute.xlu0 %665
    %s668 = scalar_lea.vmem [#allocation10], 56
    %669 = vst.msk [vmem:[%s668] sm:$0xff] %vm161, %v666
    %670 = vst.msk [vmem:[#allocation11] sm:$0xff] %vm94, %v647
    // Predicated region
    $region38: #{tpu_custom_call.1} parent=1 // pred_check
      _
    $region39: #{tpu_custom_call.1} parent=1 // pred_check_branch
      %672 = sbr.rel (0) target = $region41
    $region40: #{tpu_custom_call.1} parent=1 // pred_region
      %674 = vsyncadd [#allocation4], 0
      %s675 = sshll.u32 [#allocation10], 4
      %s676 = int_to_ptr.vmem [resolvable:$true] %s675
      %s677 = sshll.u32 %s5, 4
      %s678 = int_to_ptr.hbm [resolvable:$true] %s677
      %683 = dma.vmem_to_hbm [thread:$0]  %s676, 1024, %s678, [#allocation4], 128, 128, 8
    $region41: #{tpu_custom_call.1} parent=1 // pred_fallthru
      _
    // Predicated region
    $region42: #{tpu_custom_call.1} parent=1 // pred_check
      _
    $region43: #{tpu_custom_call.1} parent=1 // pred_check_branch
      %685 = sbr.rel (0) target = $region45
    $region44: #{tpu_custom_call.1} parent=1 // pred_region
      %687 = vsyncadd [#allocation12], 0
      %s689 = sshll.u32 [#allocation11], 4
      %s690 = int_to_ptr.vmem [resolvable:$true] %s689
      %s691 = sshll.u32 %s6, 4
      %s692 = int_to_ptr.hbm [resolvable:$true] %s691
      %694 = dma.vmem_to_hbm [thread:$0]  %s690, 128, %s692, [#allocation12]
    $region45: #{tpu_custom_call.1} parent=1 // pred_fallthru
      _
    // Predicated region
    $region46: #{tpu_custom_call.1} parent=1 // pred_check
      _
    $region47: #{tpu_custom_call.1} parent=1 // pred_check_branch
      %696 = sbr.rel (0) target = $region49
    $region48: #{tpu_custom_call.1} parent=1 // pred_region
      %698 = dma.done [#allocation4], 1024
    $region49: #{tpu_custom_call.1} parent=1 // pred_fallthru
      _
    // Predicated region
    $region50: #{tpu_custom_call.1} parent=1 // pred_check
      _
    $region51: #{tpu_custom_call.1} parent=1 // pred_check_branch
      %700 = sbr.rel (0) target = $region53
    $region52: #{tpu_custom_call.1} parent=1 // pred_region
      %702 = dma.done [#allocation12], 128
    $region53: #{tpu_custom_call.1} parent=1 // pred_fallthru
      _
    %703 = vsyncpa [#allocation3], 1
    %704 = vsyncpa [#allocation6], 1
    %705 = vsyncpa [#allocation9], 1
    %706 = vsyncpa [#allocation4], 1
    %707 = vsyncpa [#allocation12], 1

</llo_original>
